<compile_context>
chip_gen: v7x
topology: tpu7x:2x2x1
jax: 0.10.0
libtpu: 0.0.40
codegen_flags: <defaults>
</compile_context>

<pallas_src>
import jax
import jax.numpy as jnp
from jax.experimental import pallas as pl
from jax.experimental.pallas import tpu as pltpu

_EPS = 1e-5

# Tile caps (per-call tiles are derived from the actual problem shape).
_M_CAP = 128          # rows per tile (sublane dim)
_N_CAP = 1024         # full-N single block for every layer in this net (64..640)
_K_CAP = 2304         # full-K single block unless K > 2304 (only layer4 3x3x512 = 4608)


# ----------------------------------------------------------------------------- Pallas kernels
def _make_mm_kernel_single(relu, add_res, sigmoid):
    """Single K-block: one MXU dot per (i, j) tile, epilogue fused, no scratch."""
    def kernel(a_ref, b_ref, c_ref, *rest):
        if add_res:
            r_ref, o_ref = rest
        else:
            (o_ref,) = rest
        y = jnp.dot(a_ref[...], b_ref[...], preferred_element_type=jnp.float32)
        y = y + c_ref[...]
        if add_res:
            y = y + r_ref[...].astype(jnp.float32)
        if relu:
            y = jnp.maximum(y, 0.0)
        if sigmoid:
            y = jax.nn.sigmoid(y)
        o_ref[...] = y.astype(o_ref.dtype)
    return kernel


def _make_mm_kernel_multi(relu, add_res, sigmoid):
    """Multiple K-blocks: f32 VMEM accumulator, epilogue on the last k step."""
    def kernel(a_ref, b_ref, c_ref, *rest):
        if add_res:
            r_ref, o_ref, acc_ref = rest
        else:
            o_ref, acc_ref = rest
        k = pl.program_id(2)

        @pl.when(k == 0)
        def _():
            acc_ref[...] = jnp.zeros_like(acc_ref)

        acc_ref[...] += jnp.dot(a_ref[...], b_ref[...],
                                preferred_element_type=jnp.float32)

        @pl.when(k == pl.num_programs(2) - 1)
        def _():
            y = acc_ref[...] + c_ref[...]
            if add_res:
                y = y + r_ref[...].astype(jnp.float32)
            if relu:
                y = jnp.maximum(y, 0.0)
            if sigmoid:
                y = jax.nn.sigmoid(y)
            o_ref[...] = y.astype(o_ref.dtype)
    return kernel


# ----------------------------------------------------------------------------- tiling helpers
def _ru(x, m):
    return x + (-x) % m


def _pad_to(x, shape):
    pads = [(0, s - d) for d, s in zip(x.shape, shape)]
    if any(p for _, p in pads):
        return jnp.pad(x, pads)
    return x


def _tile_for(dim, unit, cap):
    """dim is a multiple of `unit`; return the largest tile <= cap that divides dim."""
    if dim <= cap:
        return dim
    t = (cap // unit) * unit
    while t > unit:
        if dim % t == 0:
            return t
        t -= unit
    return unit


# ----------------------------------------------------------------------------- fused matmul
def fused_matmul(a, b, bias, residual=None, relu=False, sigmoid=False,
                 out_dtype=jnp.float32):
    """epilogue((a @ b) + bias [+ residual]) with bf16 MXU inputs and f32 accumulation.

    BN scale is expected to be pre-folded into `b`; `bias` is the folded BN bias.
    """
    M, K = a.shape
    K2, N = b.shape
    assert K == K2

    # Pad M only to a sublane multiple; pad K/N only if they need tiling.
    Mp = _ru(M, 8)
    if K <= _K_CAP:
        Kp, TK = K, K                      # full-K block, no k grid dim
    else:
        Kp = _ru(K, 128)
        TK = _tile_for(Kp, 128, _K_CAP)
    if N <= _N_CAP:
        Np, TN = N, N                      # full-N block (lane-dense single store)
    else:
        Np = _ru(N, 128)
        TN = _tile_for(Np, 128, _N_CAP)
    TM = _tile_for(Mp, 8, _M_CAP)

    ap = _pad_to(a.astype(jnp.bfloat16), (Mp, Kp))
    bp = _pad_to(b.astype(jnp.bfloat16), (Kp, Np))
    cp = _pad_to(bias.reshape(1, -1).astype(jnp.float32), (1, Np))

    gm, gn, gk = Mp // TM, Np // TN, Kp // TK
    add_res = residual is not None
    if add_res:
        rp = _pad_to(residual.astype(jnp.bfloat16), (Mp, Np))

    if gk == 1:
        in_specs = [
            pl.BlockSpec((TM, TK), lambda i, j: (i, 0)),
            pl.BlockSpec((TK, TN), lambda i, j: (0, j)),
            pl.BlockSpec((1, TN), lambda i, j: (0, j)),
        ]
        args = [ap, bp, cp]
        if add_res:
            in_specs.append(pl.BlockSpec((TM, TN), lambda i, j: (i, j)))
            args.append(rp)
        out_specs = pl.BlockSpec((TM, TN), lambda i, j: (i, j))
        kernel = _make_mm_kernel_single(relu, add_res, sigmoid)
        grid = (gm, gn)
        scratch = []
        dims = ("parallel", "parallel")
    else:
        in_specs = [
            pl.BlockSpec((TM, TK), lambda i, j, k: (i, k)),
            pl.BlockSpec((TK, TN), lambda i, j, k: (k, j)),
            pl.BlockSpec((1, TN), lambda i, j, k: (0, j)),
        ]
        args = [ap, bp, cp]
        if add_res:
            in_specs.append(pl.BlockSpec((TM, TN), lambda i, j, k: (i, j)))
            args.append(rp)
        out_specs = pl.BlockSpec((TM, TN), lambda i, j, k: (i, j))
        kernel = _make_mm_kernel_multi(relu, add_res, sigmoid)
        grid = (gm, gn, gk)
        scratch = [pltpu.VMEM((TM, TN), jnp.float32)]
        dims = ("parallel", "parallel", "arbitrary")

    out = pl.pallas_call(
        kernel,
        out_shape=jax.ShapeDtypeStruct((Mp, Np), out_dtype),
        grid_spec=pltpu.PrefetchScalarGridSpec(
            num_scalar_prefetch=0,
            grid=grid,
            in_specs=in_specs,
            out_specs=out_specs,
            scratch_shapes=scratch,
        ),
        compiler_params=pltpu.CompilerParams(dimension_semantics=dims),
    )(*args)

    if Mp > M or Np > N:
        out = out[:M, :N]
    return out


# ----------------------------------------------------------------------------- conv / pool glue
def _im2col(x, kh, kw, stride, pad):
    n, h, w, c = x.shape
    xp = jnp.pad(x, ((0, 0), (pad, pad), (pad, pad), (0, 0)))
    ho = (h + 2 * pad - kh) // stride + 1
    wo = (w + 2 * pad - kw) // stride + 1
    cols = []
    for i in range(kh):
        for j in range(kw):
            cols.append(xp[:, i:i + stride * ho:stride, j:j + stride * wo:stride, :])
    cols = jnp.concatenate(cols, axis=-1)          # (n, ho, wo, kh*kw*c), order (kh, kw, Cin)
    return cols.reshape(n * ho * wo, kh * kw * c), ho, wo


def conv_bn(x, w, scale, bias, stride, pad, relu=True, residual=None,
            out_dtype=jnp.bfloat16):
    """x: NHWC bf16; w: (Cout, Cin, kh, kw) PyTorch layout; BN folded into scale/bias."""
    cout, cin, kh, kw = w.shape
    n = x.shape[0]
    cols, ho, wo = _im2col(x, kh, kw, stride, pad)
    wmat = jnp.transpose(w, (2, 3, 1, 0)).reshape(kh * kw * cin, cout)
    wmat = wmat * scale.reshape(1, -1)             # fold BN scale into the weights
    res = residual.reshape(-1, cout) if residual is not None else None
    out = fused_matmul(cols, wmat, bias, residual=res, relu=relu, out_dtype=out_dtype)
    return out.reshape(n, ho, wo, cout)


def maxpool2d_3x3_s2_p1(x):
    n, h, w, c = x.shape
    xp = jnp.pad(x, ((0, 0), (1, 1), (1, 1), (0, 0)), constant_values=-jnp.inf)
    ho = (h + 2 - 3) // 2 + 1
    wo = (w + 2 - 3) // 2 + 1
    out = jnp.full((n, ho, wo, c), -jnp.inf, x.dtype)
    for i in range(3):
        for j in range(3):
            out = jnp.maximum(out, xp[:, i:i + 2 * ho:2, j:j + 2 * wo:2, :])
    return out


# ----------------------------------------------------------------------------- parameters
def _fold_bn(gamma, beta, mean, var):
    scale = gamma / jnp.sqrt(var + _EPS)
    return scale.astype(jnp.float32), (beta - mean * scale).astype(jnp.float32)


def init_params(key, in_features, num_classes):
    keys = iter(jax.random.split(key, 256))

    def nrm(shape, std):
        return (std * jax.random.normal(next(keys), shape)).astype(jnp.float32)

    def conv_w(cout, cin, k):
        return nrm((cout, cin, k, k), (2.0 / (k * k * cin)) ** 0.5)

    def bn(c):
        gamma = 1.0 + 0.1 * jax.random.normal(next(keys), (c,))
        beta = 0.1 * jax.random.normal(next(keys), (c,))
        mean = 0.1 * jax.random.normal(next(keys), (c,))
        var = 1.0 + 0.1 * jax.random.uniform(next(keys), (c,))
        return _fold_bn(gamma, beta, mean, var)

    def linear(out_f, in_f):
        return nrm((out_f, in_f), 1.0 / in_f ** 0.5), nrm((out_f,), 0.01)

    p = {}
    p['conv1_w'] = conv_w(64, 3, 7)
    p['bn1_s'], p['bn1_b'] = bn(64)

    def block(cin, cout, stride):
        b = {'stride': stride}
        b['w1'] = conv_w(cout, cin, 3); b['s1'], b['b1'] = bn(cout)
        b['w2'] = conv_w(cout, cout, 3); b['s2'], b['b2'] = bn(cout)
        if stride != 1 or cin != cout:
            b['wd'] = conv_w(cout, cin, 1); b['sd'], b['bd'] = bn(cout)
        return b

    p['layer1'] = [block(64, 64, 1), block(64, 64, 1)]
    p['layer2'] = [block(64, 128, 2), block(128, 128, 1)]
    p['layer3'] = [block(128, 256, 2), block(256, 256, 1)]
    p['layer4'] = [block(256, 512, 2), block(512, 512, 1)]

    # classifier: Linear(in_features, num_classes)
    p['cls_w'], p['cls_b'] = linear(num_classes, in_features)

    # sel_model: Linear->BN1d->ReLU->Linear->BN1d->ReLU->Linear(1)->Sigmoid (eval-mode BN folded)
    w1, b1 = linear(512, in_features); s1, c1 = bn(512)
    p['sm_w1'], p['sm_s1'], p['sm_c1'] = w1, s1, s1 * b1 + c1
    w2, b2 = linear(512, 512); s2, c2 = bn(512)
    p['sm_w2'], p['sm_s2'], p['sm_c2'] = w2, s2, s2 * b2 + c2
    p['sm_w3'], p['sm_b3'] = linear(1, 512)
    return p


# ----------------------------------------------------------------------------- forward
def beakernet_forward(params, x_nchw, extras):
    p = params
    # NCHW -> NHWC, bf16 activations throughout the conv trunk.
    x = jnp.transpose(x_nchw, (0, 2, 3, 1)).astype(jnp.bfloat16)

    # ResNet-18 stem
    x = conv_bn(x, p['conv1_w'], p['bn1_s'], p['bn1_b'], stride=2, pad=3, relu=True)
    x = maxpool2d_3x3_s2_p1(x)

    # 4 stages of BasicBlocks
    for name in ('layer1', 'layer2', 'layer3', 'layer4'):
        for blk in p[name]:
            identity = x
            out = conv_bn(x, blk['w1'], blk['s1'], blk['b1'],
                          stride=blk['stride'], pad=1, relu=True)
            if 'wd' in blk:
                identity = conv_bn(x, blk['wd'], blk['sd'], blk['bd'],
                                   stride=blk['stride'], pad=0, relu=False)
            x = conv_bn(out, blk['w2'], blk['s2'], blk['b2'], stride=1, pad=1,
                        relu=True, residual=identity)

    feats = jnp.mean(x.astype(jnp.float32), axis=(1, 2))           # global avg pool -> (N, 512)
    if extras is not None:
        feats = jnp.concatenate([feats, extras], axis=1).astype(jnp.float32)

    # Fused head: classifier and sel_model[0] (Linear+folded BN1d) share one matmul.
    nc = p['cls_w'].shape[0]
    w_head = jnp.concatenate(
        [p['cls_w'].T, p['sm_w1'].T * p['sm_s1'].reshape(1, -1)], axis=1)
    b_head = jnp.concatenate([p['cls_b'], p['sm_c1']])
    head = fused_matmul(feats, w_head, b_head, out_dtype=jnp.float32)
    prediction = head[:, :nc]
    h = jnp.maximum(head[:, nc:], 0.0)                             # ReLU of sel_model[0..2]

    h = fused_matmul(h, p['sm_w2'].T * p['sm_s2'].reshape(1, -1), p['sm_c2'],
                     relu=True, out_dtype=jnp.float32)
    selection = fused_matmul(h, p['sm_w3'].T, p['sm_b3'],
                             sigmoid=True, out_dtype=jnp.float32)

    sel_pred = jnp.concatenate([prediction, selection], axis=1)    # torch.hstack
    return prediction, sel_pred


# ----------------------------------------------------------------------------- main
if __name__ == "__main__":
    cfg = dict(model='r18', extra_params=3, use_ici=1, num_classes=4, do_selnet=True)
    in_features = 512 + cfg['extra_params'] + cfg['use_ici']       # resnet18 fc.in_features = 512

    key = jax.random.PRNGKey(0)
    kx, ke, kp = jax.random.split(key, 3)
    x = jax.random.normal(kx, (2, 3, 32, 32), jnp.float32)         # NCHW, like PyTorch
    extras = jax.random.normal(ke, (2, cfg['extra_params'] + cfg['use_ici']), jnp.float32)
    params = init_params(kp, in_features, cfg['num_classes'])

    prediction, sel_pred = beakernet_forward(params, x, extras)
    jax.block_until_ready((prediction, sel_pred))

    assert prediction.shape == (2, cfg['num_classes'])
    assert sel_pred.shape == (2, cfg['num_classes'] + 1)
    assert jnp.all(jnp.isfinite(prediction)) and jnp.all(jnp.isfinite(sel_pred))
    print("KERNEL_OK")
</pallas_src>

<mosaic_0001>
module attributes {stable_mosaic.version = 11 : i64} {
  func.func @kernel(%arg0: i32, %arg1: i32, %arg2: memref<128x147xbf16, #tpu.memory_space<vmem>>, %arg3: memref<147x64xbf16, #tpu.memory_space<vmem>>, %arg4: memref<1x64xf32, #tpu.memory_space<vmem>>, %arg5: memref<128x64xbf16, #tpu.memory_space<vmem>>) attributes {dimension_semantics = [#tpu.dimension_semantics<parallel>, #tpu.dimension_semantics<parallel>], iteration_bounds = array<i64: 4, 1>, scalar_prefetch = 0 : i64, scratch_operands = 0 : i64, tpu.core_type = #tpu.core_type<tc>, window_params = [{transform_indices = @transform_0, window_bounds = array<i64: 128, 147>}, {transform_indices = @transform_1, window_bounds = array<i64: 147, 64>}, {transform_indices = @transform_2, window_bounds = array<i64: 1, 64>}, {transform_indices = @transform_3, window_bounds = array<i64: 128, 64>}]} {
    %c0 = arith.constant 0 : index
    %c0_0 = arith.constant 0 : index
    %0 = vector.load %arg2[%c0, %c0_0] : memref<128x147xbf16, #tpu.memory_space<vmem>>, vector<128x147xbf16>
    %c0_1 = arith.constant 0 : index
    %c0_2 = arith.constant 0 : index
    %1 = vector.load %arg3[%c0_1, %c0_2] : memref<147x64xbf16, #tpu.memory_space<vmem>>, vector<147x64xbf16>
    %cst = arith.constant dense<0.000000e+00> : vector<128x64xf32>
    %2 = tpu.matmul %0, %1, %cst {dimension_numbers = #tpu.dot_dimension_numbers<[1], [0], [0], [1], [0, 0, 1, 1], [], []>} : vector<128x147xbf16>, vector<147x64xbf16>, vector<128x64xf32> -> vector<128x64xf32>
    %c0_3 = arith.constant 0 : index
    %c0_4 = arith.constant 0 : index
    %3 = vector.load %arg4[%c0_3, %c0_4] : memref<1x64xf32, #tpu.memory_space<vmem>>, vector<1x64xf32>
    %4 = vector.broadcast %3 : vector<1x64xf32> to vector<128x64xf32>
    %5 = arith.addf %2, %4 : vector<128x64xf32>
    %cst_5 = arith.constant 0.000000e+00 : f32
    %6 = vector.broadcast %cst_5 : f32 to vector<128x64xf32>
    %7 = arith.maximumf %5, %6 : vector<128x64xf32>
    %8 = arith.truncf %7 : vector<128x64xf32> to vector<128x64xbf16>
    %c0_6 = arith.constant 0 : index
    %c0_7 = arith.constant 0 : index
    %9 = vector.load %arg5[%c0_6, %c0_7] : memref<128x64xbf16, #tpu.memory_space<vmem>>, vector<128x64xbf16>
    tpu.vector_store %arg5[%c0_6, %c0_7], %8 {strides = array<i32>} : memref<128x64xbf16, #tpu.memory_space<vmem>>, vector<128x64xbf16>,
    return
  }
  func.func @transform_0(%arg0: i32, %arg1: i32) -> (i32, i32) {
    %c0_i32 = arith.constant 0 : i32
    %c0_i32_0 = arith.constant 0 : i32
    return %arg0, %c0_i32 : i32, i32
  }
  func.func @transform_1(%arg0: i32, %arg1: i32) -> (i32, i32) {
    %c0_i32 = arith.constant 0 : i32
    %c0_i32_0 = arith.constant 0 : i32
    return %c0_i32, %arg1 : i32, i32
  }
  func.func @transform_2(%arg0: i32, %arg1: i32) -> (i32, i32) {
    %c0_i32 = arith.constant 0 : i32
    %c0_i32_0 = arith.constant 0 : i32
    return %c0_i32, %arg1 : i32, i32
  }
  func.func @transform_3(%arg0: i32, %arg1: i32) -> (i32, i32) {
    %c0_i32 = arith.constant 0 : i32
    return %arg0, %arg1 : i32, i32
  }
}

</mosaic_0001>

<llo_original>
// kernel: tpu_custom_call.1
$region0: #{tpu_custom_call.1}
  #allocation0 [shape = 'u32[]', space=smem, size = 0x4, offset = 0x4, fixed_abs, tag = 'smem constant byte address 0x4 - core index']
  #allocation1 [shape = 'u32[144,128]{1,0:T(1,128)}', space=vmem, size = 0x12000, scoped, tag = 'internal scratch']
  %s0 = inlined_call_operand.vmem [shape: bf16[512,147], index: 0, kind: input, shape index: {}]
  %s1 = inlined_call_operand.vmem [shape: bf16[147,64], index: 1, kind: input, shape index: {}]
  %s2 = inlined_call_operand.vmem [shape: f32[1,64], index: 2, kind: input, shape index: {}]
  %s3 = inlined_call_operand.vmem [shape: bf16[512,64], index: 3, kind: output, shape index: {}]
  %s4 = sld [smem:[#allocation0]]
  $region45: #{tpu_custom_call.1} parent=0
    _
  %s6 = ssub.s32 1, %s4
  %s7 = scalar_select 0, %s6, %s4
  loop: start=0, step=1, limit=6
  $region2: #{tpu_custom_call.1} parent=0 // loop_pre_header
    _
  $region3: #{tpu_custom_call.1} parent=0 // loop_header
    %s9 = sphi 0, %s13
    %p10 = scmp.ge.s32.totalorder %s9, 6
    %s16 = sphi 0, %s28
    %s17 = sphi 0, %s24
    %s18 = sphi 0, %s16
    %s19 = sphi 0, %s17
    %s20 = sphi 0, %s18
    %s21 = sphi 0, %s19
    %s31 = sphi 0, %s33
    %s34 = sphi 0, %s31
    %s35 = sphi 0, %s34
    %s51 = sphi 0, %s35
    %s57 = sphi 0, %s59
    %s60 = sphi 0, %s57
    %s61 = sphi 0, %s60
    %s77 = sphi 0, %s61
    %s83 = sphi 0, %s85
    %s86 = sphi 0, %s83
    %s87 = sphi 0, %s86
    %s103 = sphi 0, %s87
    %s111 = sphi 0, %s113
    %s114 = sphi 0, %s111
    %s115 = sphi 0, %s114
    %s131 = sphi 0, %s115
  $region4: #{tpu_custom_call.1} parent=0 // loop_header_branch
    %12 = sbr.rel (%p10) target = $region8
  $region5: #{tpu_custom_call.1} parent=0 // loop_body
    %s14 = ssub.s32 %s9, 1
    %s15 = ssub.s32 %s9, 2
    %s22 = sadd.s32 1, %s17
    %p23 = scmp.ge.s32.totalorder %s22, 1
    %s24 = scalar_select %p23, 0, %s22
    %s25 = sadd.s32 1, %s16
    %s26 = scalar_select %p23, %s25, %s16
    %p27 = scmp.ge.s32.totalorder %s26, 4
    %s28 = scalar_select %p27, 0, %s26
    %s29 = ssub.s32 %s16, %s28
    %p30 = scmp.eq.s32.totalorder %s29, 0
    %s32 = sadd.s32 %s31, 1
    %s33 = scalar_select %p30, %s31, %s32
    %p36 = pneg %p30
    %p37 = scmp.eq.s32.totalorder %s9, 3
    %p38 = por %p36, %p37
    %p39 = scmp.ne.s32.totalorder %s31, %s34
    %p40 = scmp.eq.s32.totalorder %s9, 0
    %p41 = por %p39, %p40
    %p42 = scmp.ne.s32.totalorder %s31, %s34
    %p43 = scmp.eq.s32.totalorder %s14, 3
    %p44 = por %p42, %p43
    %p45 = scmp.ne.s32.totalorder %s34, %s35
    %p46 = scmp.eq.s32.totalorder %s14, 0
    %p47 = por %p45, %p46
    %p48 = scmp.ne.s32.totalorder %s34, %s35
    %p49 = scmp.eq.s32.totalorder %s15, 3
    %p50 = por %p48, %p49
    %p52 = scmp.ne.s32.totalorder %s35, %s51
    %p53 = scmp.eq.s32.totalorder %s15, 0
    %p54 = por %p52, %p53
    %s55 = ssub.s32 %s17, %s24
    %p56 = scmp.eq.s32.totalorder %s55, 0
    %s58 = sadd.s32 %s57, 1
    %s59 = scalar_select %p56, %s57, %s58
    %p62 = pneg %p56
    %p63 = scmp.eq.s32.totalorder %s9, 3
    %p64 = por %p62, %p63
    %p65 = scmp.ne.s32.totalorder %s57, %s60
    %p66 = scmp.eq.s32.totalorder %s9, 0
    %p67 = por %p65, %p66
    %p68 = scmp.ne.s32.totalorder %s57, %s60
    %p69 = scmp.eq.s32.totalorder %s14, 3
    %p70 = por %p68, %p69
    %p71 = scmp.ne.s32.totalorder %s60, %s61
    %p72 = scmp.eq.s32.totalorder %s14, 0
    %p73 = por %p71, %p72
    %p74 = scmp.ne.s32.totalorder %s60, %s61
    %p75 = scmp.eq.s32.totalorder %s15, 3
    %p76 = por %p74, %p75
    %p78 = scmp.ne.s32.totalorder %s61, %s77
    %p79 = scmp.eq.s32.totalorder %s15, 0
    %p80 = por %p78, %p79
    %s81 = ssub.s32 %s17, %s24
    %p82 = scmp.eq.s32.totalorder %s81, 0
    %s84 = sadd.s32 %s83, 1
    %s85 = scalar_select %p82, %s83, %s84
    %p88 = pneg %p82
    %p89 = scmp.eq.s32.totalorder %s9, 3
    %p90 = por %p88, %p89
    %p91 = scmp.ne.s32.totalorder %s83, %s86
    %p92 = scmp.eq.s32.totalorder %s9, 0
    %p93 = por %p91, %p92
    %p94 = scmp.ne.s32.totalorder %s83, %s86
    %p95 = scmp.eq.s32.totalorder %s14, 3
    %p96 = por %p94, %p95
    %p97 = scmp.ne.s32.totalorder %s86, %s87
    %p98 = scmp.eq.s32.totalorder %s14, 0
    %p99 = por %p97, %p98
    %p100 = scmp.ne.s32.totalorder %s86, %s87
    %p101 = scmp.eq.s32.totalorder %s15, 3
    %p102 = por %p100, %p101
    %p104 = scmp.ne.s32.totalorder %s87, %s103
    %p105 = scmp.eq.s32.totalorder %s15, 0
    %p106 = por %p104, %p105
    %s107 = ssub.s32 %s16, %s28
    %s108 = ssub.s32 %s17, %s24
    %s109 = sor.u32 %s107, %s108
    %p110 = scmp.eq.s32.totalorder %s109, 0
    %s112 = sadd.s32 %s111, 1
    %s113 = scalar_select %p110, %s111, %s112
    %p116 = pneg %p110
    %p117 = scmp.eq.s32.totalorder %s9, 3
    %p118 = por %p116, %p117
    %p119 = scmp.ne.s32.totalorder %s111, %s114
    %p120 = scmp.eq.s32.totalorder %s9, 0
    %p121 = por %p119, %p120
    %p122 = scmp.ne.s32.totalorder %s111, %s114
    %p123 = scmp.eq.s32.totalorder %s14, 3
    %p124 = por %p122, %p123
    %p125 = scmp.ne.s32.totalorder %s114, %s115
    %p126 = scmp.eq.s32.totalorder %s14, 0
    %p127 = por %p125, %p126
    %p128 = scmp.ne.s32.totalorder %s114, %s115
    %p129 = scmp.eq.s32.totalorder %s15, 3
    %p130 = por %p128, %p129
    %p132 = scmp.ne.s32.totalorder %s115, %s131
    %p133 = scmp.eq.s32.totalorder %s15, 0
    %p134 = por %p132, %p133
    %p135 = scmp.le.s32.totalorder 1, %s9
    %p136 = scmp.lt.s32.totalorder %s9, 5
    %p137 = pnand %p135, %p136
    %p138 = pneg %p137
    // Predicated region
    $region9: #{tpu_custom_call.1} parent=5 // pred_check
      _
    $region10: #{tpu_custom_call.1} parent=5 // pred_check_branch
      %140 = sbr.rel (%p137) target = $region12
    $region11: #{tpu_custom_call.1} parent=5 // pred_region
      %s141 = ssub.s32 %s9, 1
      // Predicated region
      $region13: #{tpu_custom_call.1} parent=11 // pred_check
        %p142 = pneg %p73
      $region14: #{tpu_custom_call.1} parent=11 // pred_check_branch
        %144 = sbr.rel (%p142) target = $region16
      $region15: #{tpu_custom_call.1} parent=11 // pred_region
        %p145 = scmp.lt.s32.totalorder %s19, 0
        %s146 = scalar_select %p145, %s19, 0
        %s147 = smul.addr %s146, 4
        %s148 = scalar_lea.vmem %s1, %s147
      $region16: #{tpu_custom_call.1} parent=11 // pred_fallthru
        _
      // Predicated region
      $region17: #{tpu_custom_call.1} parent=11 // pred_check
        %p149 = pneg %p99
      $region18: #{tpu_custom_call.1} parent=11 // pred_check_branch
        %151 = sbr.rel (%p149) target = $region20
      $region19: #{tpu_custom_call.1} parent=11 // pred_region
        %p152 = scmp.lt.s32.totalorder %s19, 0
        %s153 = scalar_select %p152, %s19, 0
        %s154 = scalar_lea.vmem %s2, %s153
      $region20: #{tpu_custom_call.1} parent=11 // pred_fallthru
        _
    $region12: #{tpu_custom_call.1} parent=5 // pred_fallthru
      _
    %p155 = scmp.lt.s32.totalorder %s9, 4
    // Predicated region
    $region21: #{tpu_custom_call.1} parent=5 // pred_check
      %p156 = pneg %p155
    $region22: #{tpu_custom_call.1} parent=5 // pred_check_branch
      %158 = sbr.rel (%p156) target = $region24
    $region23: #{tpu_custom_call.1} parent=5 // pred_region
      // Predicated region
      $region25: #{tpu_custom_call.1} parent=23 // pred_check
        %p159 = pneg %p41
      $region26: #{tpu_custom_call.1} parent=23 // pred_check_branch
        %161 = sbr.rel (%p159) target = $region28
      $region27: #{tpu_custom_call.1} parent=23 // pred_region
        %s162 = smul.u32 16, %s16
        %p163 = scmp.lt.s32.totalorder %s162, 63
        %s164 = scalar_select %p163, %s162, 63
        %s165 = smul.addr %s164, 2
        %s166 = smul.addr %s165, 4
        %s167 = scalar_lea.vmem %s0, %s166
        %s168 = smul.u32 16, %s16
      $region28: #{tpu_custom_call.1} parent=23 // pred_fallthru
        _
    $region24: #{tpu_custom_call.1} parent=5 // pred_fallthru
      _
    %p169 = scmp.le.s32.totalorder 1, %s9
    %p170 = scmp.lt.s32.totalorder %s9, 5
    %p171 = pnand %p169, %p170
    %p172 = pneg %p171
    // Predicated region
    $region29: #{tpu_custom_call.1} parent=5 // pred_check
      _
    $region30: #{tpu_custom_call.1} parent=5 // pred_check_branch
      %174 = sbr.rel (%p171) target = $region32
    $region31: #{tpu_custom_call.1} parent=5 // pred_region
      %s175 = ssub.s32 %s9, 1
      %s176 = smul.u32 16, %s18
      %p177 = scmp.lt.s32.totalorder %s176, 63
      %s178 = scalar_select %p177, %s176, 63
      %s179 = smul.addr %s178, 2
      %s180 = smul.addr %s179, 4
      %s181 = scalar_lea.vmem %s0, %s180
      %p182 = pneg %p47
      %p183 = pneg %p44
      %p184 = scmp.lt.s32.totalorder %s19, 0
      %s185 = scalar_select %p184, %s19, 0
      %s186 = smul.addr %s185, 4
      %s187 = scalar_lea.vmem %s1, %s186
      %p188 = pneg %p73
      %p189 = pneg %p70
      %p190 = scmp.lt.s32.totalorder %s19, 0
      %s191 = scalar_select %p190, %s19, 0
      %s192 = scalar_lea.vmem %s2, %s191
      %p193 = pneg %p99
      %p194 = pneg %p96
      %p195 = pneg %p127
      %p196 = pneg %p124
      %s197 = smul.u32 16, %s18
      %p198 = scmp.lt.s32.totalorder %s197, 63
      %s199 = scalar_select %p198, %s197, 63
      %p200 = scmp.lt.s32.totalorder %s19, 0
      %s201 = scalar_select %p200, %s19, 0
      %s202 = sadd.s32 %s201, %s199
      %s203 = smul.addr %s202, 4
      %s204 = scalar_lea.vmem %s3, %s203
      %s205 = smul.u32 16, %s18
      %p206 = scmp.lt.s32.totalorder %s205, 63
      %s207 = scalar_select %p206, %s205, 63
      %s208 = smul.addr %s207, 2
      %s209 = smul.addr %s208, 4
      %s210 = scalar_lea.vmem %s0, %s209
      %s211 = smul.u32 16, %s18
      %p212 = scmp.lt.s32.totalorder %s19, 0
      %s213 = scalar_select %p212, %s19, 0
      %s214 = smul.addr %s213, 4
      %s215 = scalar_lea.vmem %s1, %s214
      %p216 = scmp.lt.s32.totalorder %s19, 0
      %s217 = scalar_select %p216, %s19, 0
      %s218 = scalar_lea.vmem %s2, %s217
      %s219 = smul.u32 16, %s18
      %p220 = scmp.lt.s32.totalorder %s219, 63
      %s221 = scalar_select %p220, %s219, 63
      %p222 = scmp.lt.s32.totalorder %s19, 0
      %s223 = scalar_select %p222, %s19, 0
      %s224 = sadd.s32 %s223, %s221
      %s225 = smul.addr %s224, 4
      %s226 = scalar_lea.vmem %s3, %s225
      %s227 = smul.u32 16, %s18
      %v229 = vld [vmem:[%s210] sm:$0xff]
      %v230 = vld [vmem:[%s210 + $0x8] sm:$0xff]
      %v231 = vld [vmem:[%s210 + $0x10] sm:$0xff]
      %v232 = vld [vmem:[%s210 + $0x18] sm:$0xff]
      %v233 = vld [vmem:[%s210 + $0x20] sm:$0xff]
      %v234 = vld [vmem:[%s210 + $0x28] sm:$0xff]
      %v235 = vld [vmem:[%s210 + $0x30] sm:$0xff]
      %v236 = vld [vmem:[%s210 + $0x38] sm:$0xff]
      %v237 = vld [vmem:[%s210 + $0x40] sm:$0xff]
      %v238 = vld [vmem:[%s210 + $0x48] sm:$0xff]
      %v239 = vld [vmem:[%s210 + $0x50] sm:$0xff]
      %v240 = vld [vmem:[%s210 + $0x58] sm:$0xff]
      %v241 = vld [vmem:[%s210 + $0x60] sm:$0xff]
      %v242 = vld [vmem:[%s210 + $0x68] sm:$0xff]
      %v243 = vld [vmem:[%s210 + $0x70] sm:$0xff]
      %v244 = vld [vmem:[%s210 + $0x78] sm:$0xff]
      %v245 = vld [vmem:[%s215] sm:$0xf]
      %v246 = vld [vmem:[%s215 + $0x4] sm:$0xf]
      %v247 = vld [vmem:[%s215 + $0x8] sm:$0xf]
      %v248 = vld [vmem:[%s215 + $0xc] sm:$0xf]
      %v249 = vld [vmem:[%s215 + $0x10] sm:$0xf]
      %v250 = vld [vmem:[%s215 + $0x14] sm:$0xf]
      %v251 = vld [vmem:[%s215 + $0x18] sm:$0xf]
      %v252 = vld [vmem:[%s215 + $0x1c] sm:$0xf]
      %v253 = vld [vmem:[%s215 + $0x20] sm:$0xf]
      %v254 = vld [vmem:[%s215 + $0x24] sm:$0xf]
      %v255 = vld [vmem:[%s215 + $0x28] sm:$0xf]
      %v256 = vld [vmem:[%s215 + $0x2c] sm:$0xf]
      %v257 = vld [vmem:[%s215 + $0x30] sm:$0xf]
      %v258 = vld [vmem:[%s215 + $0x34] sm:$0xf]
      %v259 = vld [vmem:[%s215 + $0x38] sm:$0xf]
      %v260 = vld [vmem:[%s215 + $0x3c] sm:$0xf]
      %v261 = vld [vmem:[%s215 + $0x40] sm:$0xf]
      %v262 = vld [vmem:[%s215 + $0x44] sm:$0xf]
      %v263 = vld [vmem:[%s215 + $0x48] sm:$0x3]
      %v264 = vld [vmem:[%s218] sm:$0x1]
      %v266 = vlaneseq
      %v267 = vshrl.u32 %v266, 7
      %v268 = vsub.s32 0, %v267
      %v269 = vrot.slane %v264, %v268
      %v287 = vunpack.c.l.b16 %v229
      %v288 = vunpack.c.h.b16 %v229
      %v289 = vunpack.c.l.b16 %v230
      %v290 = vunpack.c.h.b16 %v230
      %v291 = vunpack.c.l.b16 %v231
      %v292 = vunpack.c.h.b16 %v231
      %v293 = vunpack.c.l.b16 %v232
      %v294 = vunpack.c.h.b16 %v232
      %v295 = vunpack.c.l.b16 %v233
      %v296 = vunpack.c.h.b16 %v233
      %v297 = vunpack.c.l.b16 %v234
      %v298 = vunpack.c.h.b16 %v234
      %v299 = vunpack.c.l.b16 %v235
      %v300 = vunpack.c.h.b16 %v235
      %v301 = vunpack.c.l.b16 %v236
      %v302 = vunpack.c.h.b16 %v236
      %v303 = vunpack.c.l.b16 %v237
      %v304 = vunpack.c.h.b16 %v237
      %v305 = vunpack.c.l.b16 %v238
      %v306 = vunpack.c.h.b16 %v238
      %v307 = vunpack.c.l.b16 %v239
      %v308 = vunpack.c.h.b16 %v239
      %v309 = vunpack.c.l.b16 %v240
      %v310 = vunpack.c.h.b16 %v240
      %v311 = vunpack.c.l.b16 %v241
      %v312 = vunpack.c.h.b16 %v241
      %v313 = vunpack.c.l.b16 %v242
      %v314 = vunpack.c.h.b16 %v242
      %v315 = vunpack.c.l.b16 %v243
      %v316 = vunpack.c.h.b16 %v243
      %v317 = vunpack.c.l.b16 %v244
      %v318 = vunpack.c.h.b16 %v244
      %v319 = vpack.c.b16 %v289, %v287
      %v320 = vpack.c.b16 %v290, %v288
      %v321 = vpack.c.b16 %v293, %v291
      %v322 = vpack.c.b16 %v294, %v292
      %v323 = vpack.c.b16 %v297, %v295
      %v324 = vpack.c.b16 %v298, %v296
      %v325 = vpack.c.b16 %v301, %v299
      %v326 = vpack.c.b16 %v302, %v300
      %v327 = vpack.c.b16 %v305, %v303
      %v328 = vpack.c.b16 %v306, %v304
      %v329 = vpack.c.b16 %v309, %v307
      %v330 = vpack.c.b16 %v310, %v308
      %v331 = vpack.c.b16 %v313, %v311
      %v332 = vpack.c.b16 %v314, %v312
      %v333 = vpack.c.b16 %v317, %v315
      %v334 = vpack.c.b16 %v318, %v316
      %v362 = vunpack.c.l.b16 %v245
      %v363 = vunpack.c.l.b16 %v246
      %v364 = vunpack.c.l.b16 %v247
      %v365 = vunpack.c.l.b16 %v248
      %v366 = vunpack.c.l.b16 %v249
      %v367 = vunpack.c.l.b16 %v250
      %v368 = vunpack.c.l.b16 %v251
      %v369 = vunpack.c.l.b16 %v252
      %v370 = vunpack.c.l.b16 %v253
      %v371 = vunpack.c.l.b16 %v254
      %v372 = vunpack.c.l.b16 %v255
      %v373 = vunpack.c.l.b16 %v256
      %v374 = vunpack.c.l.b16 %v257
      %v375 = vunpack.c.l.b16 %v258
      %v376 = vunpack.c.l.b16 %v259
      %v377 = vunpack.c.l.b16 %v260
      %v378 = vunpack.c.l.b16 %v261
      %v379 = vunpack.c.l.b16 %v262
      %v380 = vunpack.c.l.b16 %v263
      %v381 = vpack.c.b16 %v363, %v362
      %v382 = vpack.c.b16 %v365, %v364
      %v383 = vpack.c.b16 %v367, %v366
      %v384 = vpack.c.b16 %v369, %v368
      %v385 = vpack.c.b16 %v371, %v370
      %v386 = vpack.c.b16 %v373, %v372
      %v387 = vpack.c.b16 %v375, %v374
      %v388 = vpack.c.b16 %v377, %v376
      %v389 = vpack.c.b16 %v379, %v378
      %v390 = vpack.c.b16 %v380, %v380
      %vm400 = vcmask 154624
      %v402 = vsel %vm400, %v320, 0
      %v405 = vsel %vm400, %v322, 0
      %v408 = vsel %vm400, %v324, 0
      %v411 = vsel %vm400, %v326, 0
      %v414 = vsel %vm400, %v328, 0
      %v417 = vsel %vm400, %v330, 0
      %v420 = vsel %vm400, %v332, 0
      %v423 = vsel %vm400, %v334, 0
      %vm425 = vcmask 1040384
      %vm426 = vcmask 1041408
      %v427 = vsel %vm425, 4294967295, 65535
      %v428 = vsel %vm426, %v427, 0
      %v430 = vand.u32 %v390, %v428
      %432 = vmatprep.subr.bf16.mxu0 0
      %433 = vmatpush1.bf16.msra.mxu0 %v381
      %434 = vmatprep.subr.bf16.mxu0 0
      %435 = vmatpush1.bf16.msra.mxu0 %v382
      %436 = vmatprep.subr.bf16.mxu0 0
      %437 = vmatpush1.bf16.msra.mxu0 %v383
      %438 = vmatprep.subr.bf16.mxu0 0
      %439 = vmatpush1.bf16.msra.mxu0 %v384
      %440 = vmatprep.subr.bf16.mxu0 0
      %441 = vmatpush1.bf16.msra.mxu0 %v385
      %442 = vmatprep.subr.bf16.mxu0 0
      %443 = vmatpush1.bf16.msra.mxu0 %v386
      %444 = vmatprep.subr.bf16.mxu0 0
      %445 = vmatpush1.bf16.msra.mxu0 %v387
      %446 = vmatprep.subr.bf16.mxu0 0
      %447 = vmatpush1.bf16.msra.mxu0 %v388
      %448 = vmatprep.subr.bf16.mxu0 0
      %449 = vmatpush1.bf16.msra.mxu0 %v389
      %450 = vmatprep.subr.bf16.mxu0 0
      %451 = vmatpush1.bf16.msra.mxu0 %v430
      %452 = vmatprep.subr.bf16.mxu0 0
      %453 = vmatpush1.bf16.msra.mxu0 0
      %454 = vmatprep.subr.bf16.mxu0 0
      %455 = vmatpush1.bf16.msra.mxu0 0
      %456 = vmatprep.subr.bf16.mxu0 0
      %457 = vmatpush1.bf16.msra.mxu0 0
      %458 = vmatprep.subr.bf16.mxu0 0
      %459 = vmatpush1.bf16.msra.mxu0 0
      %460 = vmatprep.subr.bf16.mxu0 0
      %461 = vmatpush1.bf16.msra.mxu0 0
      %462 = vmatprep.subr.bf16.mxu0 0
      %463 = vmatpush1.bf16.msra.mxu0 0
      %464 = vmatprep.mubr.bf16.mxu0 %v402
      %465 = vmatmul.mubr.bf16.gmra.mrb[0].mxu0 %v319
      %v466 = vpop.f32.mrb[0].mxu0
      %v467 = vadd.f32 %v269, %v466
      %v468 = vpop.f32.mrb[0].mxu0
      %v469 = vpop.f32.mrb[0].mxu0
      %v470 = vadd.f32 %v269, %v469
      %v471 = vpop.f32.mrb[0].mxu0
      %472 = vmatprep.mubr.bf16.mxu0 %v405
      %473 = vmatmul.mubr.bf16.gmra.mrb[0].mxu0 %v321
      %v474 = vpop.f32.mrb[0].mxu0
      %v475 = vadd.f32 %v269, %v474
      %v476 = vpop.f32.mrb[0].mxu0
      %v477 = vpop.f32.mrb[0].mxu0
      %v478 = vadd.f32 %v269, %v477
      %v479 = vpop.f32.mrb[0].mxu0
      %480 = vmatprep.mubr.bf16.mxu0 %v408
      %481 = vmatmul.mubr.bf16.gmra.mrb[0].mxu0 %v323
      %v482 = vpop.f32.mrb[0].mxu0
      %v483 = vadd.f32 %v269, %v482
      %v484 = vpop.f32.mrb[0].mxu0
      %v485 = vpop.f32.mrb[0].mxu0
      %v486 = vadd.f32 %v269, %v485
      %v487 = vpop.f32.mrb[0].mxu0
      %488 = vmatprep.mubr.bf16.mxu0 %v411
      %489 = vmatmul.mubr.bf16.gmra.mrb[0].mxu0 %v325
      %v490 = vpop.f32.mrb[0].mxu0
      %v491 = vadd.f32 %v269, %v490
      %v492 = vpop.f32.mrb[0].mxu0
      %v493 = vpop.f32.mrb[0].mxu0
      %v494 = vadd.f32 %v269, %v493
      %v495 = vpop.f32.mrb[0].mxu0
      %496 = vmatprep.mubr.bf16.mxu0 %v414
      %497 = vmatmul.mubr.bf16.gmra.mrb[0].mxu0 %v327
      %v498 = vpop.f32.mrb[0].mxu0
      %v499 = vadd.f32 %v269, %v498
      %v500 = vpop.f32.mrb[0].mxu0
      %v501 = vpop.f32.mrb[0].mxu0
      %v502 = vadd.f32 %v269, %v501
      %v503 = vpop.f32.mrb[0].mxu0
      %504 = vmatprep.mubr.bf16.mxu0 %v417
      %505 = vmatmul.mubr.bf16.gmra.mrb[0].mxu0 %v329
      %v506 = vpop.f32.mrb[0].mxu0
      %v507 = vadd.f32 %v269, %v506
      %v508 = vpop.f32.mrb[0].mxu0
      %v509 = vpop.f32.mrb[0].mxu0
      %v510 = vadd.f32 %v269, %v509
      %v511 = vpop.f32.mrb[0].mxu0
      %512 = vmatprep.mubr.bf16.mxu0 %v420
      %513 = vmatmul.mubr.bf16.gmra.mrb[0].mxu0 %v331
      %v514 = vpop.f32.mrb[0].mxu0
      %v515 = vadd.f32 %v269, %v514
      %v516 = vpop.f32.mrb[0].mxu0
      %v517 = vpop.f32.mrb[0].mxu0
      %v518 = vadd.f32 %v269, %v517
      %v519 = vpop.f32.mrb[0].mxu0
      %520 = vmatprep.mubr.bf16.mxu0 %v423
      %521 = vmatmul.mubr.bf16.gmra.mrb[0].mxu0 %v333
      %v522 = vpop.f32.mrb[0].mxu0
      %v523 = vadd.f32 %v269, %v522
      %v524 = vpop.f32.mrb[0].mxu0
      %v525 = vpop.f32.mrb[0].mxu0
      %v526 = vadd.f32 %v269, %v525
      %v527 = vpop.f32.mrb[0].mxu0
      %528 = vdwg.mxu0
      %v529 = vmax.f32 %v467, 0.0
      %v530 = vmax.f32 %v470, 0.0
      %v531 = vmax.f32 %v475, 0.0
      %v532 = vmax.f32 %v478, 0.0
      %v533 = vmax.f32 %v483, 0.0
      %v534 = vmax.f32 %v486, 0.0
      %v535 = vmax.f32 %v491, 0.0
      %v536 = vmax.f32 %v494, 0.0
      %v537 = vmax.f32 %v499, 0.0
      %v538 = vmax.f32 %v502, 0.0
      %v539 = vmax.f32 %v507, 0.0
      %v540 = vmax.f32 %v510, 0.0
      %v541 = vmax.f32 %v515, 0.0
      %v542 = vmax.f32 %v518, 0.0
      %v543 = vmax.f32 %v523, 0.0
      %v544 = vmax.f32 %v526, 0.0
      %v545 = vpack.c.bf16 %v530, %v529
      %v546 = vpack.c.bf16 %v532, %v531
      %v547 = vpack.c.bf16 %v534, %v533
      %v548 = vpack.c.bf16 %v536, %v535
      %v549 = vpack.c.bf16 %v538, %v537
      %v550 = vpack.c.bf16 %v540, %v539
      %v551 = vpack.c.bf16 %v542, %v541
      %v552 = vpack.c.bf16 %v544, %v543
      %v561 = vunpack.c.l.b16 %v545
      %v562 = vunpack.c.h.b16 %v545
      %v563 = vunpack.c.l.b16 %v546
      %v564 = vunpack.c.h.b16 %v546
      %v565 = vunpack.c.l.b16 %v547
      %v566 = vunpack.c.h.b16 %v547
      %v567 = vunpack.c.l.b16 %v548
      %v568 = vunpack.c.h.b16 %v548
      %v569 = vunpack.c.l.b16 %v549
      %v570 = vunpack.c.h.b16 %v549
      %v571 = vunpack.c.l.b16 %v550
      %v572 = vunpack.c.h.b16 %v550
      %v573 = vunpack.c.l.b16 %v551
      %v574 = vunpack.c.h.b16 %v551
      %v575 = vunpack.c.l.b16 %v552
      %v576 = vunpack.c.h.b16 %v552
      %v577 = vpack.c.b16 %v561, %v561
      %v578 = vpack.c.b16 %v562, %v562
      %v579 = vpack.c.b16 %v563, %v563
      %v580 = vpack.c.b16 %v564, %v564
      %v581 = vpack.c.b16 %v565, %v565
      %v582 = vpack.c.b16 %v566, %v566
      %v583 = vpack.c.b16 %v567, %v567
      %v584 = vpack.c.b16 %v568, %v568
      %v585 = vpack.c.b16 %v569, %v569
      %v586 = vpack.c.b16 %v570, %v570
      %v587 = vpack.c.b16 %v571, %v571
      %v588 = vpack.c.b16 %v572, %v572
      %v589 = vpack.c.b16 %v573, %v573
      %v590 = vpack.c.b16 %v574, %v574
      %v591 = vpack.c.b16 %v575, %v575
      %v592 = vpack.c.b16 %v576, %v576
      %vm609 = vcmask 519168
      %610 = vst.msk [vmem:[%s226] sm:$0xf] %vm609, %v577
      %611 = vst.msk [vmem:[%s226 + $0x4] sm:$0xf] %vm609, %v578
      %612 = vst.msk [vmem:[%s226 + $0x8] sm:$0xf] %vm609, %v579
      %613 = vst.msk [vmem:[%s226 + $0xc] sm:$0xf] %vm609, %v580
      %614 = vst.msk [vmem:[%s226 + $0x10] sm:$0xf] %vm609, %v581
      %615 = vst.msk [vmem:[%s226 + $0x14] sm:$0xf] %vm609, %v582
      %616 = vst.msk [vmem:[%s226 + $0x18] sm:$0xf] %vm609, %v583
      %617 = vst.msk [vmem:[%s226 + $0x1c] sm:$0xf] %vm609, %v584
      %618 = vst.msk [vmem:[%s226 + $0x20] sm:$0xf] %vm609, %v585
      %619 = vst.msk [vmem:[%s226 + $0x24] sm:$0xf] %vm609, %v586
      %620 = vst.msk [vmem:[%s226 + $0x28] sm:$0xf] %vm609, %v587
      %621 = vst.msk [vmem:[%s226 + $0x2c] sm:$0xf] %vm609, %v588
      %622 = vst.msk [vmem:[%s226 + $0x30] sm:$0xf] %vm609, %v589
      %623 = vst.msk [vmem:[%s226 + $0x34] sm:$0xf] %vm609, %v590
      %624 = vst.msk [vmem:[%s226 + $0x38] sm:$0xf] %vm609, %v591
      %625 = vst.msk [vmem:[%s226 + $0x3c] sm:$0xf] %vm609, %v592
      %s626 = smul.u32 16, %s18
      %p627 = scmp.lt.s32.totalorder %s626, 63
      %s628 = scalar_select %p627, %s626, 63
      %p629 = scmp.lt.s32.totalorder %s19, 0
      %s630 = scalar_select %p629, %s19, 0
      %s631 = sadd.s32 %s630, %s628
      %s632 = smul.addr %s631, 4
      %s633 = scalar_lea.vmem %s3, %s632
      // Predicated region
      $region33: #{tpu_custom_call.1} parent=31 // pred_check
        %p634 = pneg %p124
      $region34: #{tpu_custom_call.1} parent=31 // pred_check_branch
        %636 = sbr.rel (%p634) target = $region36
      $region35: #{tpu_custom_call.1} parent=31 // pred_region
        %s637 = smul.u32 16, %s18
      $region36: #{tpu_custom_call.1} parent=31 // pred_fallthru
        _
    $region32: #{tpu_custom_call.1} parent=5 // pred_fallthru
      _
    %p638 = scmp.le.s32.totalorder 2, %s9
    // Predicated region
    $region37: #{tpu_custom_call.1} parent=5 // pred_check
      %p639 = pneg %p638
    $region38: #{tpu_custom_call.1} parent=5 // pred_check_branch
      %641 = sbr.rel (%p639) target = $region40
    $region39: #{tpu_custom_call.1} parent=5 // pred_region
      %s642 = ssub.s32 %s9, 2
      // Predicated region
      $region41: #{tpu_custom_call.1} parent=39 // pred_check
        %p643 = pneg %p130
      $region42: #{tpu_custom_call.1} parent=39 // pred_check_branch
        %645 = sbr.rel (%p643) target = $region44
      $region43: #{tpu_custom_call.1} parent=39 // pred_region
        %s646 = smul.u32 16, %s20
        %p647 = scmp.lt.s32.totalorder %s646, 63
        %s648 = scalar_select %p647, %s646, 63
        %p649 = scmp.lt.s32.totalorder %s21, 0
        %s650 = scalar_select %p649, %s21, 0
        %s651 = sadd.s32 %s650, %s648
        %s652 = smul.addr %s651, 4
        %s653 = scalar_lea.vmem %s3, %s652
      $region44: #{tpu_custom_call.1} parent=39 // pred_fallthru
        _
    $region40: #{tpu_custom_call.1} parent=5 // pred_fallthru
      _
  $region6: #{tpu_custom_call.1} parent=0 // loop_footer
    %s13 = sadd.s32 1, %s9
  $region7: #{tpu_custom_call.1} parent=0 // loop_footer_branch
    %8 = sbr.rel target = $region3
  $region8: #{tpu_custom_call.1} parent=0 // loop_exit
    _

</llo_original>
